<compile_context>
chip_gen: v5e
topology: v5e:2x2
jax: 0.10.0
libtpu: 0.0.40
codegen_flags: <defaults>
</compile_context>

<pallas_src>
import jax
import jax.numpy as jnp
from jax import lax
from jax.experimental import pallas as pl
from jax.experimental.pallas import tpu as pltpu

MATMUL_DTYPE = jnp.bfloat16   # MXU-native; set to jnp.float32 for bit-tight checking


def _round_up(x, m):
    return ((x + m - 1) // m) * m


def _make_kernel(C, Cp, K, pad, Wp, P, Pr, E, B):
    Wl = B * Pr                 # output lane extent per step (multiple of 128)
    deltas = [(kh - pad) * Wp + (kw - pad) for kh in range(K) for kw in range(K)]

    def kernel(x_ref, mask_ref, w1_ref, b1_ref, w2_ref, b2_ref, out_ref,
               xbuf_ref, y1buf_ref):
        # x_ref    : (B, C, P)        spatially zero-padded images, flattened grid
        # mask_ref : (1, Wl)          1.0 on each image's original HxW interior, else 0.0
        # w*_ref   : (Cp, K*K*Cp)     bf16, channel-padded, layout (c_out, tap*Cp + c_in)
        # b*_ref   : (Cp, 1)          f32, channel-padded
        # out_ref  : (1, Cp, Wl)      per-step output (halo/filler lanes are garbage)
        # xbuf/y1buf: (Cp, Wl + 2*E)  f32 VMEM slabs with zero flanks

        # Build the flanked, channel-padded input slab in VMEM (no extra HBM pad pass).
        xbuf_ref[...] = jnp.zeros_like(xbuf_ref)
        for b in range(B):
            xbuf_ref[0:C, E + b * Pr: E + b * Pr + P] = x_ref[b].astype(jnp.float32)

        def conv_mm(buf_ref, w_ref, b_ref):
            # im2col: K*K shifted windows stacked along the contraction (sublane) axis,
            # one lane-dense bf16 MXU matmul with f32 accumulation.
            patches = jnp.concatenate(
                [buf_ref[:, E + d: E + d + Wl] for d in deltas], axis=0)   # (K*K*Cp, Wl)
            acc = jnp.dot(w_ref[...], patches.astype(w_ref.dtype),
                          preferred_element_type=jnp.float32)              # (Cp, Wl)
            return acc + b_ref[...]

        # conv1 + bias + ReLU; mask zeroes halo/filler so it acts as conv2's SAME padding
        y1 = jnp.maximum(conv_mm(xbuf_ref, w1_ref, b1_ref), 0.0) * mask_ref[...]
        y1buf_ref[:, 0:E] = jnp.zeros((Cp, E), jnp.float32)
        y1buf_ref[:, E + Wl: E + Wl + E] = jnp.zeros((Cp, E), jnp.float32)
        y1buf_ref[:, E: E + Wl] = y1

        # conv2 + bias, residual (read from the same slab: single x stream), final ReLU
        h2 = conv_mm(y1buf_ref, w2_ref, b2_ref)
        x_res = xbuf_ref[:, E: E + Wl]
        out_ref[0] = jnp.maximum(x_res + h2, 0.0).astype(out_ref.dtype)

    return kernel


def residual_block_pallas(x_nchw, w1, b1, w2, b2, *, images_per_step=8):
    """x_nchw: (N, C, H, W).  w*: (K, K, C, C) HWIO, b*: (C,).  Returns (N, C, H, W)."""
    N, C, H, W = x_nchw.shape
    K = w1.shape[0]
    pad = (K - 1) // 2
    Hp, Wp = H + 2 * pad, W + 2 * pad
    P = Hp * Wp
    Pr = _round_up(P, 128)                     # lane-aligned per-image extent
    E = _round_up(pad * Wp + pad, 128)         # flank covering the largest tap offset
    Cp = _round_up(C, 8)                       # f32 sublane tile

    B = max(1, min(N, images_per_step))        # images folded into lanes per grid step
    steps = -(-N // B)
    Nb = steps * B
    Wl = B * Pr

    # single HBM pass: batch pad + spatial zero-pad, flatten the padded grid into lanes
    xpad = jnp.pad(x_nchw, ((0, Nb - N), (0, 0), (pad, pad), (pad, pad)))
    xflat = xpad.reshape(Nb, C, P)

    # interior mask over the per-step lane extent (1 on original HxW, 0 on halo/filler)
    mask1 = (jnp.zeros((Hp, Wp), jnp.float32)
             .at[pad:pad + H, pad:pad + W].set(1.0).reshape(P))
    mask = jnp.tile(jnp.pad(mask1, (0, Pr - P)), B).reshape(1, Wl)

    # HWIO (K,K,C,C) -> channel-pad to Cp -> (Cp, K*K*Cp), pre-cast once to the MXU dtype
    def prep_w(w):
        wp = jnp.pad(w, ((0, 0), (0, 0), (0, Cp - C), (0, Cp - C)))
        return jnp.transpose(wp.reshape(K * K * Cp, Cp)).astype(MATMUL_DTYPE)

    w1m, w2m = prep_w(w1), prep_w(w2)
    b1c = jnp.pad(b1, (0, Cp - C)).reshape(Cp, 1).astype(jnp.float32)
    b2c = jnp.pad(b2, (0, Cp - C)).reshape(Cp, 1).astype(jnp.float32)

    kernel = _make_kernel(C=C, Cp=Cp, K=K, pad=pad, Wp=Wp, P=P, Pr=Pr, E=E, B=B)

    out = pl.pallas_call(
        kernel,
        out_shape=jax.ShapeDtypeStruct((steps, Cp, Wl), x_nchw.dtype),
        grid_spec=pltpu.PrefetchScalarGridSpec(
            num_scalar_prefetch=0,
            grid=(steps,),
            in_specs=[
                pl.BlockSpec((B, C, P), lambda s: (s, 0, 0)),
                pl.BlockSpec((1, Wl), lambda s: (0, 0)),
                pl.BlockSpec((Cp, K * K * Cp), lambda s: (0, 0)),
                pl.BlockSpec((Cp, 1), lambda s: (0, 0)),
                pl.BlockSpec((Cp, K * K * Cp), lambda s: (0, 0)),
                pl.BlockSpec((Cp, 1), lambda s: (0, 0)),
            ],
            out_specs=pl.BlockSpec((1, Cp, Wl), lambda s: (s, 0, 0)),
            scratch_shapes=[pltpu.VMEM((Cp, Wl + 2 * E), jnp.float32),
                            pltpu.VMEM((Cp, Wl + 2 * E), jnp.float32)],
        ),
        compiler_params=pltpu.CompilerParams(
            dimension_semantics=("parallel",),
            vmem_limit_bytes=32 * 1024 * 1024,
        ),
    )(xflat, mask, w1m, b1c, w2m, b2c)

    # (steps, Cp, B*Pr) -> (Nb, Cp, Pr) -> drop padded channels / filler / halo / batch pad
    out = out.reshape(steps, Cp, B, Pr).transpose(0, 2, 1, 3).reshape(Nb, Cp, Pr)
    out = out[:N, :C, :P].reshape(N, C, Hp, Wp)[:, :, pad:pad + H, pad:pad + W]
    return out


def _reference(x, w1, b1, w2, b2):
    """Plain-JAX f32 reference (NCHW conv via lax) used to self-check the kernel."""
    dn = lax.conv_dimension_numbers(x.shape, w1.shape, ("NCHW", "HWIO", "NCHW"))
    y1 = lax.conv_general_dilated(x, w1, (1, 1), "SAME", dimension_numbers=dn)
    y1 = jnp.maximum(y1 + b1.reshape(1, -1, 1, 1), 0.0)
    y2 = lax.conv_general_dilated(y1, w2, (1, 1), "SAME", dimension_numbers=dn)
    y2 = y2 + b2.reshape(1, -1, 1, 1)
    return jnp.maximum(x + y2, 0.0)


if __name__ == "__main__":
    N, C, H, W = 2, 4, 16, 16
    K = 3

    key = jax.random.PRNGKey(0)
    kx, kw1, kb1, kw2, kb2 = jax.random.split(key, 5)

    x = jax.random.normal(kx, (N, C, H, W), dtype=jnp.float32)
    # Deterministic PyTorch-Conv2d-like uniform init: bound = 1/sqrt(C*K*K)
    bound = 1.0 / (C * K * K) ** 0.5
    w1 = jax.random.uniform(kw1, (K, K, C, C), jnp.float32, -bound, bound)
    b1 = jax.random.uniform(kb1, (C,), jnp.float32, -bound, bound)
    w2 = jax.random.uniform(kw2, (K, K, C, C), jnp.float32, -bound, bound)
    b2 = jax.random.uniform(kb2, (C,), jnp.float32, -bound, bound)

    out = jax.block_until_ready(residual_block_pallas(x, w1, b1, w2, b2))
    ref = jax.block_until_ready(_reference(x, w1, b1, w2, b2))

    assert out.shape == (N, C, H, W)
    # bf16 MXU operands (f32 accumulation): tolerance loosened vs the f32-only variant.
    assert jnp.allclose(out, ref, atol=2e-2, rtol=2e-2), "mismatch vs reference"

    print("KERNEL_OK")
</pallas_src>

<mosaic_0001>
module attributes {stable_mosaic.version = 11 : i64} {
  func.func @kernel(%arg0: i32, %arg1: memref<2x4x324xf32, #tpu.memory_space<vmem>>, %arg2: memref<1x768xf32, #tpu.memory_space<vmem>>, %arg3: memref<8x72xbf16, #tpu.memory_space<vmem>>, %arg4: memref<8x1xf32, #tpu.memory_space<vmem>>, %arg5: memref<8x72xbf16, #tpu.memory_space<vmem>>, %arg6: memref<8x1xf32, #tpu.memory_space<vmem>>, %arg7: memref<1x8x768xf32, #tpu.memory_space<vmem>>, %arg8: memref<8x1024xf32, #tpu.memory_space<vmem>>, %arg9: memref<8x1024xf32, #tpu.memory_space<vmem>>) attributes {dimension_semantics = [#tpu.dimension_semantics<parallel>], iteration_bounds = array<i64: 1>, scalar_prefetch = 0 : i64, scratch_operands = 2 : i64, tpu.core_type = #tpu.core_type<tc>, window_params = [{transform_indices = @transform_0, window_bounds = array<i64: 2, 4, 324>}, {pipeline_mode = #tpu.pipeline_mode<synchronous>, transform_indices = @transform_1, window_bounds = array<i64: 1, 768>}, {pipeline_mode = #tpu.pipeline_mode<synchronous>, transform_indices = @transform_2, window_bounds = array<i64: 8, 72>}, {pipeline_mode = #tpu.pipeline_mode<synchronous>, transform_indices = @transform_3, window_bounds = array<i64: 8, 1>}, {pipeline_mode = #tpu.pipeline_mode<synchronous>, transform_indices = @transform_4, window_bounds = array<i64: 8, 72>}, {pipeline_mode = #tpu.pipeline_mode<synchronous>, transform_indices = @transform_5, window_bounds = array<i64: 8, 1>}, {transform_indices = @transform_6, window_bounds = array<i64: 1, 8, 768>}]} {
    %cst = arith.constant 0.000000e+00 : f32
    %0 = vector.broadcast %cst : f32 to vector<8x1024xf32>
    %c0 = arith.constant 0 : index
    %c0_0 = arith.constant 0 : index
    %1 = vector.load %arg8[%c0, %c0_0] : memref<8x1024xf32, #tpu.memory_space<vmem>>, vector<8x1024xf32>
    tpu.vector_store %arg8[%c0, %c0_0], %0 {strides = array<i32>} : memref<8x1024xf32, #tpu.memory_space<vmem>>, vector<8x1024xf32>,
    %c0_1 = arith.constant 0 : index
    %c0_2 = arith.constant 0 : index
    %c0_3 = arith.constant 0 : index
    %2 = vector.load %arg1[%c0_1, %c0_2, %c0_3] : memref<2x4x324xf32, #tpu.memory_space<vmem>>, vector<1x4x324xf32>
    %3 = vector.shape_cast %2 : vector<1x4x324xf32> to vector<4x324xf32>
    %c0_4 = arith.constant 0 : index
    %c128 = arith.constant 128 : index
    %4 = vector.load %arg8[%c0_4, %c128] : memref<8x1024xf32, #tpu.memory_space<vmem>>, vector<4x324xf32>
    tpu.vector_store %arg8[%c0_4, %c128], %3 {strides = array<i32>} : memref<8x1024xf32, #tpu.memory_space<vmem>>, vector<4x324xf32>,
    %c1 = arith.constant 1 : index
    %c0_5 = arith.constant 0 : index
    %c0_6 = arith.constant 0 : index
    %5 = vector.load %arg1[%c1, %c0_5, %c0_6] : memref<2x4x324xf32, #tpu.memory_space<vmem>>, vector<1x4x324xf32>
    %6 = vector.shape_cast %5 : vector<1x4x324xf32> to vector<4x324xf32>
    %c0_7 = arith.constant 0 : index
    %c512 = arith.constant 512 : index
    %7 = vector.load %arg8[%c0_7, %c512] : memref<8x1024xf32, #tpu.memory_space<vmem>>, vector<4x324xf32>
    tpu.vector_store %arg8[%c0_7, %c512], %6 {strides = array<i32>} : memref<8x1024xf32, #tpu.memory_space<vmem>>, vector<4x324xf32>,
    %c0_8 = arith.constant 0 : index
    %c109 = arith.constant 109 : index
    %8 = vector.load %arg8[%c0_8, %c109] : memref<8x1024xf32, #tpu.memory_space<vmem>>, vector<8x768xf32>
    %c0_9 = arith.constant 0 : index
    %c110 = arith.constant 110 : index
    %9 = vector.load %arg8[%c0_9, %c110] : memref<8x1024xf32, #tpu.memory_space<vmem>>, vector<8x768xf32>
    %c0_10 = arith.constant 0 : index
    %c111 = arith.constant 111 : index
    %10 = vector.load %arg8[%c0_10, %c111] : memref<8x1024xf32, #tpu.memory_space<vmem>>, vector<8x768xf32>
    %c0_11 = arith.constant 0 : index
    %c127 = arith.constant 127 : index
    %11 = vector.load %arg8[%c0_11, %c127] : memref<8x1024xf32, #tpu.memory_space<vmem>>, vector<8x768xf32>
    %c0_12 = arith.constant 0 : index
    %c128_13 = arith.constant 128 : index
    %12 = vector.load %arg8[%c0_12, %c128_13] : memref<8x1024xf32, #tpu.memory_space<vmem>>, vector<8x768xf32>
    %c0_14 = arith.constant 0 : index
    %c129 = arith.constant 129 : index
    %13 = vector.load %arg8[%c0_14, %c129] : memref<8x1024xf32, #tpu.memory_space<vmem>>, vector<8x768xf32>
    %c0_15 = arith.constant 0 : index
    %c145 = arith.constant 145 : index
    %14 = vector.load %arg8[%c0_15, %c145] : memref<8x1024xf32, #tpu.memory_space<vmem>>, vector<8x768xf32>
    %c0_16 = arith.constant 0 : index
    %c146 = arith.constant 146 : index
    %15 = vector.load %arg8[%c0_16, %c146] : memref<8x1024xf32, #tpu.memory_space<vmem>>, vector<8x768xf32>
    %c0_17 = arith.constant 0 : index
    %c147 = arith.constant 147 : index
    %16 = vector.load %arg8[%c0_17, %c147] : memref<8x1024xf32, #tpu.memory_space<vmem>>, vector<8x768xf32>
    %17 = tpu.concatenate %8, %9, %10, %11, %12, %13, %14, %15, %16 in 0 : vector<8x768xf32>, vector<8x768xf32>, vector<8x768xf32>, vector<8x768xf32>, vector<8x768xf32>, vector<8x768xf32>, vector<8x768xf32>, vector<8x768xf32>, vector<8x768xf32> -> vector<72x768xf32>
    %c0_18 = arith.constant 0 : index
    %c0_19 = arith.constant 0 : index
    %18 = vector.load %arg3[%c0_18, %c0_19] : memref<8x72xbf16, #tpu.memory_space<vmem>>, vector<8x72xbf16>
    %19 = arith.truncf %17 : vector<72x768xf32> to vector<72x768xbf16>
    %cst_20 = arith.constant dense<0.000000e+00> : vector<8x768xf32>
    %20 = tpu.matmul %18, %19, %cst_20 {dimension_numbers = #tpu.dot_dimension_numbers<[1], [0], [0], [1], [0, 0, 1, 1], [], []>} : vector<8x72xbf16>, vector<72x768xbf16>, vector<8x768xf32> -> vector<8x768xf32>
    %c0_21 = arith.constant 0 : index
    %c0_22 = arith.constant 0 : index
    %21 = vector.load %arg4[%c0_21, %c0_22] : memref<8x1xf32, #tpu.memory_space<vmem>>, vector<8x1xf32>
    %22 = vector.broadcast %21 : vector<8x1xf32> to vector<8x768xf32>
    %23 = arith.addf %20, %22 : vector<8x768xf32>
    %cst_23 = arith.constant 0.000000e+00 : f32
    %24 = vector.broadcast %cst_23 : f32 to vector<8x768xf32>
    %25 = arith.maximumf %23, %24 : vector<8x768xf32>
    %c0_24 = arith.constant 0 : index
    %c0_25 = arith.constant 0 : index
    %26 = vector.load %arg2[%c0_24, %c0_25] : memref<1x768xf32, #tpu.memory_space<vmem>>, vector<1x768xf32>
    %27 = vector.broadcast %26 : vector<1x768xf32> to vector<8x768xf32>
    %28 = arith.mulf %25, %27 : vector<8x768xf32>
    %cst_26 = arith.constant 0.000000e+00 : f32
    %29 = vector.broadcast %cst_26 : f32 to vector<8x128xf32>
    %c0_27 = arith.constant 0 : index
    %c0_28 = arith.constant 0 : index
    %30 = vector.load %arg9[%c0_27, %c0_28] : memref<8x1024xf32, #tpu.memory_space<vmem>>, vector<8x128xf32>
    tpu.vector_store %arg9[%c0_27, %c0_28], %29 {strides = array<i32>} : memref<8x1024xf32, #tpu.memory_space<vmem>>, vector<8x128xf32>,
    %cst_29 = arith.constant 0.000000e+00 : f32
    %31 = vector.broadcast %cst_29 : f32 to vector<8x128xf32>
    %c0_30 = arith.constant 0 : index
    %c896 = arith.constant 896 : index
    %32 = vector.load %arg9[%c0_30, %c896] : memref<8x1024xf32, #tpu.memory_space<vmem>>, vector<8x128xf32>
    tpu.vector_store %arg9[%c0_30, %c896], %31 {strides = array<i32>} : memref<8x1024xf32, #tpu.memory_space<vmem>>, vector<8x128xf32>,
    %c0_31 = arith.constant 0 : index
    %c128_32 = arith.constant 128 : index
    %33 = vector.load %arg9[%c0_31, %c128_32] : memref<8x1024xf32, #tpu.memory_space<vmem>>, vector<8x768xf32>
    tpu.vector_store %arg9[%c0_31, %c128_32], %28 {strides = array<i32>} : memref<8x1024xf32, #tpu.memory_space<vmem>>, vector<8x768xf32>,
    %c0_33 = arith.constant 0 : index
    %c109_34 = arith.constant 109 : index
    %34 = vector.load %arg9[%c0_33, %c109_34] : memref<8x1024xf32, #tpu.memory_space<vmem>>, vector<8x768xf32>
    %c0_35 = arith.constant 0 : index
    %c110_36 = arith.constant 110 : index
    %35 = vector.load %arg9[%c0_35, %c110_36] : memref<8x1024xf32, #tpu.memory_space<vmem>>, vector<8x768xf32>
    %c0_37 = arith.constant 0 : index
    %c111_38 = arith.constant 111 : index
    %36 = vector.load %arg9[%c0_37, %c111_38] : memref<8x1024xf32, #tpu.memory_space<vmem>>, vector<8x768xf32>
    %c0_39 = arith.constant 0 : index
    %c127_40 = arith.constant 127 : index
    %37 = vector.load %arg9[%c0_39, %c127_40] : memref<8x1024xf32, #tpu.memory_space<vmem>>, vector<8x768xf32>
    %c0_41 = arith.constant 0 : index
    %c128_42 = arith.constant 128 : index
    %38 = vector.load %arg9[%c0_41, %c128_42] : memref<8x1024xf32, #tpu.memory_space<vmem>>, vector<8x768xf32>
    %c0_43 = arith.constant 0 : index
    %c129_44 = arith.constant 129 : index
    %39 = vector.load %arg9[%c0_43, %c129_44] : memref<8x1024xf32, #tpu.memory_space<vmem>>, vector<8x768xf32>
    %c0_45 = arith.constant 0 : index
    %c145_46 = arith.constant 145 : index
    %40 = vector.load %arg9[%c0_45, %c145_46] : memref<8x1024xf32, #tpu.memory_space<vmem>>, vector<8x768xf32>
    %c0_47 = arith.constant 0 : index
    %c146_48 = arith.constant 146 : index
    %41 = vector.load %arg9[%c0_47, %c146_48] : memref<8x1024xf32, #tpu.memory_space<vmem>>, vector<8x768xf32>
    %c0_49 = arith.constant 0 : index
    %c147_50 = arith.constant 147 : index
    %42 = vector.load %arg9[%c0_49, %c147_50] : memref<8x1024xf32, #tpu.memory_space<vmem>>, vector<8x768xf32>
    %43 = tpu.concatenate %34, %35, %36, %37, %38, %39, %40, %41, %42 in 0 : vector<8x768xf32>, vector<8x768xf32>, vector<8x768xf32>, vector<8x768xf32>, vector<8x768xf32>, vector<8x768xf32>, vector<8x768xf32>, vector<8x768xf32>, vector<8x768xf32> -> vector<72x768xf32>
    %c0_51 = arith.constant 0 : index
    %c0_52 = arith.constant 0 : index
    %44 = vector.load %arg5[%c0_51, %c0_52] : memref<8x72xbf16, #tpu.memory_space<vmem>>, vector<8x72xbf16>
    %45 = arith.truncf %43 : vector<72x768xf32> to vector<72x768xbf16>
    %cst_53 = arith.constant dense<0.000000e+00> : vector<8x768xf32>
    %46 = tpu.matmul %44, %45, %cst_53 {dimension_numbers = #tpu.dot_dimension_numbers<[1], [0], [0], [1], [0, 0, 1, 1], [], []>} : vector<8x72xbf16>, vector<72x768xbf16>, vector<8x768xf32> -> vector<8x768xf32>
    %c0_54 = arith.constant 0 : index
    %c0_55 = arith.constant 0 : index
    %47 = vector.load %arg6[%c0_54, %c0_55] : memref<8x1xf32, #tpu.memory_space<vmem>>, vector<8x1xf32>
    %48 = vector.broadcast %47 : vector<8x1xf32> to vector<8x768xf32>
    %49 = arith.addf %46, %48 : vector<8x768xf32>
    %c0_56 = arith.constant 0 : index
    %c128_57 = arith.constant 128 : index
    %50 = vector.load %arg8[%c0_56, %c128_57] : memref<8x1024xf32, #tpu.memory_space<vmem>>, vector<8x768xf32>
    %51 = arith.addf %50, %49 : vector<8x768xf32>
    %cst_58 = arith.constant 0.000000e+00 : f32
    %52 = vector.broadcast %cst_58 : f32 to vector<8x768xf32>
    %53 = arith.maximumf %51, %52 : vector<8x768xf32>
    %c0_59 = arith.constant 0 : index
    %c0_60 = arith.constant 0 : index
    %c0_61 = arith.constant 0 : index
    %54 = vector.load %arg7[%c0_59, %c0_60, %c0_61] : memref<1x8x768xf32, #tpu.memory_space<vmem>>, vector<1x8x768xf32>
    %55 = vector.shape_cast %54 : vector<1x8x768xf32> to vector<8x768xf32>
    %56 = vector.shape_cast %53 : vector<8x768xf32> to vector<1x8x768xf32>
    tpu.vector_store %arg7[%c0_59, %c0_60, %c0_61], %56 {strides = array<i32>} : memref<1x8x768xf32, #tpu.memory_space<vmem>>, vector<1x8x768xf32>,
    return
  }
  func.func @transform_0(%arg0: i32) -> (i32, i32, i32) {
    %c0_i32 = arith.constant 0 : i32
    %c0_i32_0 = arith.constant 0 : i32
    %c0_i32_1 = arith.constant 0 : i32
    return %arg0, %c0_i32, %c0_i32_0 : i32, i32, i32
  }
  func.func @transform_1(%arg0: i32) -> (i32, i32) {
    %c0_i32 = arith.constant 0 : i32
    %c0_i32_0 = arith.constant 0 : i32
    %c0_i32_1 = arith.constant 0 : i32
    return %c0_i32, %c0_i32_0 : i32, i32
  }
  func.func @transform_2(%arg0: i32) -> (i32, i32) {
    %c0_i32 = arith.constant 0 : i32
    %c0_i32_0 = arith.constant 0 : i32
    %c0_i32_1 = arith.constant 0 : i32
    return %c0_i32, %c0_i32_0 : i32, i32
  }
  func.func @transform_3(%arg0: i32) -> (i32, i32) {
    %c0_i32 = arith.constant 0 : i32
    %c0_i32_0 = arith.constant 0 : i32
    %c0_i32_1 = arith.constant 0 : i32
    return %c0_i32, %c0_i32_0 : i32, i32
  }
  func.func @transform_4(%arg0: i32) -> (i32, i32) {
    %c0_i32 = arith.constant 0 : i32
    %c0_i32_0 = arith.constant 0 : i32
    %c0_i32_1 = arith.constant 0 : i32
    return %c0_i32, %c0_i32_0 : i32, i32
  }
  func.func @transform_5(%arg0: i32) -> (i32, i32) {
    %c0_i32 = arith.constant 0 : i32
    %c0_i32_0 = arith.constant 0 : i32
    %c0_i32_1 = arith.constant 0 : i32
    return %c0_i32, %c0_i32_0 : i32, i32
  }
  func.func @transform_6(%arg0: i32) -> (i32, i32, i32) {
    %c0_i32 = arith.constant 0 : i32
    %c0_i32_0 = arith.constant 0 : i32
    %c0_i32_1 = arith.constant 0 : i32
    return %arg0, %c0_i32, %c0_i32_0 : i32, i32, i32
  }
}

</mosaic_0001>

<llo_original>
// kernel: tpu_custom_call.1
$region0: #{tpu_custom_call.1}
  #allocation0 [shape = 'u32[]', space=smem, size = 0x4, offset = 0x4, fixed_abs, tag = 'smem constant byte address 0x4 - core index']
  #allocation1 [shape = 'u32[72,128]{1,0:T(1,128)}', space=vmem, size = 0x9000, scoped, tag = 'internal scratch']
  #allocation2 [shape = 'f32[8,1024]{1,0:T(8,128)}', space=vmem, size = 0x8000, scoped, tag = 'scratch operand']
  #allocation3 [shape = 'f32[8,1024]{1,0:T(8,128)}', space=vmem, size = 0x8000, scoped, tag = 'scratch operand']
  %s0 = inlined_call_operand.hbm [shape: f32[2,4,324], index: 0, kind: input, shape index: {}]
  %s1 = inlined_call_operand.vmem [shape: f32[1,768], index: 1, kind: input, shape index: {}]
  %s2 = inlined_call_operand.vmem [shape: bf16[8,72], index: 2, kind: input, shape index: {}]
  %s3 = inlined_call_operand.vmem [shape: f32[8,1], index: 3, kind: input, shape index: {}]
  %s4 = inlined_call_operand.vmem [shape: bf16[8,72], index: 4, kind: input, shape index: {}]
  %s5 = inlined_call_operand.vmem [shape: f32[8,1], index: 5, kind: input, shape index: {}]
  %s6 = inlined_call_operand.hbm [shape: f32[1,8,768], index: 6, kind: output, shape index: {}]
  %s7 = sld [smem:[#allocation0]]
  $region38: #{tpu_custom_call.1} parent=0
    _
  %s9 = ssub.s32 1, %s7
  %s10 = scalar_select 0, %s9, %s7
  $region1: #{tpu_custom_call.1} parent=0
    #allocation4 [shape = 'u8[12288]{0}', space=vmem, size = 0x3000, scoped, tag = 'input window, operand 0, single buffered']
    #allocation5 [shape = 's32[1]{0}', space=sflag, size = 0x4, scoped, tag = 'scoped memory for tpu_custom_call.1']
    #allocation6 [shape = 's32[1]{0}', space=sflag, size = 0x4, scoped, tag = 'scoped memory for tpu_custom_call.1']
    #allocation7 [shape = 'u8[24576]{0}', space=vmem, size = 0x6000, scoped, tag = 'output window, operand 0, single buffered']
    %11 = vsyncpa [#allocation5], 0
    %12 = vsyncpa [#allocation6], 0
    // Predicated region
    $region2: #{tpu_custom_call.1} parent=1 // pred_check
      _
    $region3: #{tpu_custom_call.1} parent=1 // pred_check_branch
      %14 = sbr.rel (0) target = $region5
    $region4: #{tpu_custom_call.1} parent=1 // pred_region
      %16 = vsyncadd [#allocation5], 0
      %s17 = sshll.u32 %s0, 4
      %s18 = int_to_ptr.hbm [resolvable:$true] %s17
      %s19 = sshll.u32 [#allocation4], 4
      %s20 = int_to_ptr.vmem [resolvable:$true] %s19
      %25 = dma.hbm_to_vmem [thread:$0]  %s18, 384, %s20, [#allocation5], 192, 192, 12
    $region5: #{tpu_custom_call.1} parent=1 // pred_fallthru
      _
    // Predicated region
    $region6: #{tpu_custom_call.1} parent=1 // pred_check
      _
    $region7: #{tpu_custom_call.1} parent=1 // pred_check_branch
      %27 = sbr.rel (0) target = $region9
    $region8: #{tpu_custom_call.1} parent=1 // pred_region
      _
    $region9: #{tpu_custom_call.1} parent=1 // pred_fallthru
      _
    // Predicated region
    $region10: #{tpu_custom_call.1} parent=1 // pred_check
      _
    $region11: #{tpu_custom_call.1} parent=1 // pred_check_branch
      %29 = sbr.rel (0) target = $region13
    $region12: #{tpu_custom_call.1} parent=1 // pred_region
      _
    $region13: #{tpu_custom_call.1} parent=1 // pred_fallthru
      _
    // Predicated region
    $region14: #{tpu_custom_call.1} parent=1 // pred_check
      _
    $region15: #{tpu_custom_call.1} parent=1 // pred_check_branch
      %31 = sbr.rel (0) target = $region17
    $region16: #{tpu_custom_call.1} parent=1 // pred_region
      _
    $region17: #{tpu_custom_call.1} parent=1 // pred_fallthru
      _
    // Predicated region
    $region18: #{tpu_custom_call.1} parent=1 // pred_check
      _
    $region19: #{tpu_custom_call.1} parent=1 // pred_check_branch
      %33 = sbr.rel (0) target = $region21
    $region20: #{tpu_custom_call.1} parent=1 // pred_region
      _
    $region21: #{tpu_custom_call.1} parent=1 // pred_fallthru
      _
    // Predicated region
    $region22: #{tpu_custom_call.1} parent=1 // pred_check
      _
    $region23: #{tpu_custom_call.1} parent=1 // pred_check_branch
      %35 = sbr.rel (0) target = $region25
    $region24: #{tpu_custom_call.1} parent=1 // pred_region
      _
    $region25: #{tpu_custom_call.1} parent=1 // pred_fallthru
      _
    // Predicated region
    $region26: #{tpu_custom_call.1} parent=1 // pred_check
      _
    $region27: #{tpu_custom_call.1} parent=1 // pred_check_branch
      %37 = sbr.rel (0) target = $region29
    $region28: #{tpu_custom_call.1} parent=1 // pred_region
      %39 = dma.done [#allocation5], 384
    $region29: #{tpu_custom_call.1} parent=1 // pred_fallthru
      _
    %41 = vst [vmem:[#allocation2] sm:$0xff] 0.0
    %42 = vst [vmem:[#allocation2 + $0x8] sm:$0xff] 0.0
    %43 = vst [vmem:[#allocation2 + $0x10] sm:$0xff] 0.0
    %44 = vst [vmem:[#allocation2 + $0x18] sm:$0xff] 0.0
    %45 = vst [vmem:[#allocation2 + $0x20] sm:$0xff] 0.0
    %46 = vst [vmem:[#allocation2 + $0x28] sm:$0xff] 0.0
    %47 = vst [vmem:[#allocation2 + $0x30] sm:$0xff] 0.0
    %48 = vst [vmem:[#allocation2 + $0x38] sm:$0xff] 0.0
    %v49 = vld [vmem:[#allocation4] sm:$0xff]
    %v50 = vld [vmem:[#allocation4 + $0x8] sm:$0xf]
    %53 = vst [vmem:[#allocation1] ss:$2 sm:$0xff] %v49
    %s54 = scalar_lea.vmem [#allocation1], 16
    %55 = vst [vmem:[%s54] ss:$2 sm:$0xff] %v50
    %v56 = vld.sshfl [vmem:[#allocation1] sm:$0xff pattern:$0x75316420]
    %v57 = vld.sshfl [vmem:[#allocation1 + $0x8] sm:$0xff pattern:$0x75316420]
    %v58 = vld.sshfl [vmem:[#allocation1 + $0x10] sm:$0xff pattern:$0x75316420]
    %62 = vst [vmem:[#allocation2 + $0x8] sm:$0xf] %v56
    %63 = vst [vmem:[#allocation2 + $0x10] sm:$0xf] %v57
    %vm64 = vcmask 551936
    %65 = vst.msk [vmem:[#allocation2 + $0x18] sm:$0xf] %vm64, %v58
    %s66 = scalar_lea.vmem [#allocation4], 12
    %v67 = vld [vmem:[%s66] sm:$0xff]
    %v68 = vld [vmem:[%s66 + $0x8] sm:$0xf]
    %71 = vst [vmem:[#allocation1] ss:$2 sm:$0xff] %v67
    %s72 = scalar_lea.vmem [#allocation1], 16
    %73 = vst [vmem:[%s72] ss:$2 sm:$0xff] %v68
    %v74 = vld.sshfl [vmem:[#allocation1] sm:$0xff pattern:$0x75316420]
    %v75 = vld.sshfl [vmem:[#allocation1 + $0x8] sm:$0xff pattern:$0x75316420]
    %v76 = vld.sshfl [vmem:[#allocation1 + $0x10] sm:$0xff pattern:$0x75316420]
    %80 = vst [vmem:[#allocation2 + $0x20] sm:$0xf] %v74
    %81 = vst [vmem:[#allocation2 + $0x28] sm:$0xf] %v75
    %82 = vst.msk [vmem:[#allocation2 + $0x30] sm:$0xf] %vm64, %v76
    %v83 = vld [vmem:[#allocation2] sm:$0xff]
    %v84 = vld [vmem:[#allocation2 + $0x8] sm:$0xff]
    %v85 = vld [vmem:[#allocation2 + $0x10] sm:$0xff]
    %v86 = vld [vmem:[#allocation2 + $0x18] sm:$0xff]
    %v87 = vld [vmem:[#allocation2 + $0x20] sm:$0xff]
    %v88 = vld [vmem:[#allocation2 + $0x28] sm:$0xff]
    %v89 = vld [vmem:[#allocation2 + $0x30] sm:$0xff]
    %v90 = vld [vmem:[#allocation2 + $0x8] sm:$0xff]
    %v91 = vld [vmem:[#allocation2 + $0x10] sm:$0xff]
    %v92 = vld [vmem:[#allocation2 + $0x18] sm:$0xff]
    %v93 = vld [vmem:[#allocation2 + $0x20] sm:$0xff]
    %v94 = vld [vmem:[#allocation2 + $0x28] sm:$0xff]
    %v95 = vld [vmem:[#allocation2 + $0x30] sm:$0xff]
    %v96 = vld [vmem:[#allocation2 + $0x38] sm:$0xff]
    %104 = vrot.lane.b32.xlu0 %v83, 127
    %v105 = vpop.permute.xlu0 %104
    %106 = vrot.lane.b32.xlu0 %v84, 127
    %v107 = vpop.permute.xlu0 %106
    %108 = vrot.lane.b32.xlu0 %v85, 127
    %v109 = vpop.permute.xlu0 %108
    %110 = vrot.lane.b32.xlu0 %v86, 127
    %v111 = vpop.permute.xlu0 %110
    %112 = vrot.lane.b32.xlu0 %v87, 127
    %v113 = vpop.permute.xlu0 %112
    %114 = vrot.lane.b32.xlu0 %v88, 127
    %v115 = vpop.permute.xlu0 %114
    %116 = vrot.lane.b32.xlu0 %v89, 127
    %v117 = vpop.permute.xlu0 %116
    %vm118 = vcmask 1039360
    %v119 = vsel %vm118, %v105, %v107
    %v120 = vsel %vm118, %v107, %v109
    %v121 = vsel %vm118, %v109, %v111
    %v122 = vsel %vm118, %v111, %v113
    %v123 = vsel %vm118, %v113, %v115
    %v124 = vsel %vm118, %v115, %v117
    %132 = vrot.lane.b32.xlu0 %v83, 126
    %v133 = vpop.permute.xlu0 %132
    %134 = vrot.lane.b32.xlu0 %v84, 126
    %v135 = vpop.permute.xlu0 %134
    %136 = vrot.lane.b32.xlu0 %v85, 126
    %v137 = vpop.permute.xlu0 %136
    %138 = vrot.lane.b32.xlu0 %v86, 126
    %v139 = vpop.permute.xlu0 %138
    %140 = vrot.lane.b32.xlu0 %v87, 126
    %v141 = vpop.permute.xlu0 %140
    %142 = vrot.lane.b32.xlu0 %v88, 126
    %v143 = vpop.permute.xlu0 %142
    %144 = vrot.lane.b32.xlu0 %v89, 126
    %v145 = vpop.permute.xlu0 %144
    %vm146 = vcmask 1031168
    %v147 = vsel %vm146, %v133, %v135
    %v148 = vsel %vm146, %v135, %v137
    %v149 = vsel %vm146, %v137, %v139
    %v150 = vsel %vm146, %v139, %v141
    %v151 = vsel %vm146, %v141, %v143
    %v152 = vsel %vm146, %v143, %v145
    %160 = vrot.lane.b32.xlu0 %v83, 110
    %v161 = vpop.permute.xlu0 %160
    %162 = vrot.lane.b32.xlu0 %v84, 110
    %v163 = vpop.permute.xlu0 %162
    %164 = vrot.lane.b32.xlu0 %v85, 110
    %v165 = vpop.permute.xlu0 %164
    %166 = vrot.lane.b32.xlu0 %v86, 110
    %v167 = vpop.permute.xlu0 %166
    %168 = vrot.lane.b32.xlu0 %v87, 110
    %v169 = vpop.permute.xlu0 %168
    %170 = vrot.lane.b32.xlu0 %v88, 110
    %v171 = vpop.permute.xlu0 %170
    %172 = vrot.lane.b32.xlu0 %v89, 110
    %v173 = vpop.permute.xlu0 %172
    %vm174 = vcmask 900096
    %v175 = vsel %vm174, %v161, %v163
    %v176 = vsel %vm174, %v163, %v165
    %v177 = vsel %vm174, %v165, %v167
    %v178 = vsel %vm174, %v167, %v169
    %v179 = vsel %vm174, %v169, %v171
    %v180 = vsel %vm174, %v171, %v173
    %188 = vrot.lane.b32.xlu0 %v84, 109
    %v189 = vpop.permute.xlu0 %188
    %190 = vrot.lane.b32.xlu0 %v85, 109
    %v191 = vpop.permute.xlu0 %190
    %192 = vrot.lane.b32.xlu0 %v86, 109
    %v193 = vpop.permute.xlu0 %192
    %194 = vrot.lane.b32.xlu0 %v87, 109
    %v195 = vpop.permute.xlu0 %194
    %196 = vrot.lane.b32.xlu0 %v88, 109
    %v197 = vpop.permute.xlu0 %196
    %198 = vrot.lane.b32.xlu0 %v89, 109
    %v199 = vpop.permute.xlu0 %198
    %vm200 = vcmask 891904
    %v201 = vsel %vm200, %v189, %v191
    %v202 = vsel %vm200, %v191, %v193
    %v203 = vsel %vm200, %v193, %v195
    %v204 = vsel %vm200, %v195, %v197
    %v205 = vsel %vm200, %v197, %v199
    %220 = vrot.lane.b32.xlu0 %v90, 108
    %v221 = vpop.permute.xlu0 %220
    %222 = vrot.lane.b32.xlu0 %v91, 108
    %v223 = vpop.permute.xlu0 %222
    %224 = vrot.lane.b32.xlu0 %v92, 108
    %v225 = vpop.permute.xlu0 %224
    %226 = vrot.lane.b32.xlu0 %v93, 108
    %v227 = vpop.permute.xlu0 %226
    %228 = vrot.lane.b32.xlu0 %v94, 108
    %v229 = vpop.permute.xlu0 %228
    %230 = vrot.lane.b32.xlu0 %v95, 108
    %v231 = vpop.permute.xlu0 %230
    %232 = vrot.lane.b32.xlu0 %v96, 108
    %v233 = vpop.permute.xlu0 %232
    %vm234 = vcmask 883712
    %v235 = vsel %vm234, %v221, %v223
    %v236 = vsel %vm234, %v223, %v225
    %v237 = vsel %vm234, %v225, %v227
    %v238 = vsel %vm234, %v227, %v229
    %v239 = vsel %vm234, %v229, %v231
    %v240 = vsel %vm234, %v231, %v233
    %248 = vrot.lane.b32.xlu0 %v90, 92
    %v249 = vpop.permute.xlu0 %248
    %250 = vrot.lane.b32.xlu0 %v91, 92
    %v251 = vpop.permute.xlu0 %250
    %252 = vrot.lane.b32.xlu0 %v92, 92
    %v253 = vpop.permute.xlu0 %252
    %254 = vrot.lane.b32.xlu0 %v93, 92
    %v255 = vpop.permute.xlu0 %254
    %256 = vrot.lane.b32.xlu0 %v94, 92
    %v257 = vpop.permute.xlu0 %256
    %258 = vrot.lane.b32.xlu0 %v95, 92
    %v259 = vpop.permute.xlu0 %258
    %260 = vrot.lane.b32.xlu0 %v96, 92
    %v261 = vpop.permute.xlu0 %260
    %vm262 = vcmask 752640
    %v263 = vsel %vm262, %v249, %v251
    %v264 = vsel %vm262, %v251, %v253
    %v265 = vsel %vm262, %v253, %v255
    %v266 = vsel %vm262, %v255, %v257
    %v267 = vsel %vm262, %v257, %v259
    %v268 = vsel %vm262, %v259, %v261
    %276 = vrot.lane.b32.xlu0 %v90, 91
    %v277 = vpop.permute.xlu0 %276
    %278 = vrot.lane.b32.xlu0 %v91, 91
    %v279 = vpop.permute.xlu0 %278
    %280 = vrot.lane.b32.xlu0 %v92, 91
    %v281 = vpop.permute.xlu0 %280
    %282 = vrot.lane.b32.xlu0 %v93, 91
    %v283 = vpop.permute.xlu0 %282
    %284 = vrot.lane.b32.xlu0 %v94, 91
    %v285 = vpop.permute.xlu0 %284
    %286 = vrot.lane.b32.xlu0 %v95, 91
    %v287 = vpop.permute.xlu0 %286
    %288 = vrot.lane.b32.xlu0 %v96, 91
    %v289 = vpop.permute.xlu0 %288
    %vm290 = vcmask 744448
    %v291 = vsel %vm290, %v277, %v279
    %v292 = vsel %vm290, %v279, %v281
    %v293 = vsel %vm290, %v281, %v283
    %v294 = vsel %vm290, %v283, %v285
    %v295 = vsel %vm290, %v285, %v287
    %v296 = vsel %vm290, %v287, %v289
    %304 = vrot.lane.b32.xlu0 %v90, 90
    %v305 = vpop.permute.xlu0 %304
    %306 = vrot.lane.b32.xlu0 %v91, 90
    %v307 = vpop.permute.xlu0 %306
    %308 = vrot.lane.b32.xlu0 %v92, 90
    %v309 = vpop.permute.xlu0 %308
    %310 = vrot.lane.b32.xlu0 %v93, 90
    %v311 = vpop.permute.xlu0 %310
    %312 = vrot.lane.b32.xlu0 %v94, 90
    %v313 = vpop.permute.xlu0 %312
    %314 = vrot.lane.b32.xlu0 %v95, 90
    %v315 = vpop.permute.xlu0 %314
    %316 = vrot.lane.b32.xlu0 %v96, 90
    %v317 = vpop.permute.xlu0 %316
    %vm318 = vcmask 736256
    %v319 = vsel %vm318, %v305, %v307
    %v320 = vsel %vm318, %v307, %v309
    %v321 = vsel %vm318, %v309, %v311
    %v322 = vsel %vm318, %v311, %v313
    %v323 = vsel %vm318, %v313, %v315
    %v324 = vsel %vm318, %v315, %v317
    %v332 = vld [vmem:[%s2] sm:$0xf]
    %v333 = vpack.c.bf16 %v119, %v83
    %v334 = vpack.c.bf16 %v120, %v84
    %v335 = vpack.c.bf16 %v121, %v85
    %v336 = vpack.c.bf16 %v122, %v86
    %v337 = vpack.c.bf16 %v123, %v87
    %v338 = vpack.c.bf16 %v124, %v88
    %v339 = vpack.c.bf16 %v117, %v89
    %v340 = vpack.c.bf16 %v175, %v147
    %v341 = vpack.c.bf16 %v176, %v148
    %v342 = vpack.c.bf16 %v177, %v149
    %v343 = vpack.c.bf16 %v178, %v150
    %v344 = vpack.c.bf16 %v179, %v151
    %v345 = vpack.c.bf16 %v180, %v152
    %v346 = vpack.c.bf16 %v173, %v145
    %v347 = vpack.c.bf16 %v221, %v189
    %v348 = vpack.c.bf16 %v235, %v201
    %v349 = vpack.c.bf16 %v236, %v202
    %v350 = vpack.c.bf16 %v237, %v203
    %v351 = vpack.c.bf16 %v238, %v204
    %v352 = vpack.c.bf16 %v239, %v205
    %v353 = vpack.c.bf16 %v240, %v199
    %v354 = vpack.c.bf16 %v277, %v249
    %v355 = vpack.c.bf16 %v291, %v263
    %v356 = vpack.c.bf16 %v292, %v264
    %v357 = vpack.c.bf16 %v293, %v265
    %v358 = vpack.c.bf16 %v294, %v266
    %v359 = vpack.c.bf16 %v295, %v267
    %v360 = vpack.c.bf16 %v296, %v268
    %v361 = vpack.c.bf16 %v305, %v305
    %v362 = vpack.c.bf16 %v319, %v319
    %v363 = vpack.c.bf16 %v320, %v320
    %v364 = vpack.c.bf16 %v321, %v321
    %v365 = vpack.c.bf16 %v322, %v322
    %v366 = vpack.c.bf16 %v323, %v323
    %v367 = vpack.c.bf16 %v324, %v324
    %v368 = vld [vmem:[%s3] sm:$0xff]
    %370 = vset.pattern.permute.xlu0 0
    %371 = vperm.xlu0 %370, %v368
    %v372 = vpop.permute.xlu0 %371
    %409 = vrot.lane.b32.xlu0 %v333, 19
    %v410 = vpop.permute.xlu0 %409
    %411 = vrot.lane.b32.xlu0 %v334, 19
    %v412 = vpop.permute.xlu0 %411
    %413 = vrot.lane.b32.xlu0 %v335, 19
    %v414 = vpop.permute.xlu0 %413
    %415 = vrot.lane.b32.xlu0 %v336, 19
    %v416 = vpop.permute.xlu0 %415
    %417 = vrot.lane.b32.xlu0 %v337, 19
    %v418 = vpop.permute.xlu0 %417
    %419 = vrot.lane.b32.xlu0 %v338, 19
    %v420 = vpop.permute.xlu0 %419
    %421 = vrot.lane.b32.xlu0 %v339, 19
    %v422 = vpop.permute.xlu0 %421
    %423 = vrot.lane.b32.xlu0 %v340, 19
    %v424 = vpop.permute.xlu0 %423
    %425 = vrot.lane.b32.xlu0 %v341, 19
    %v426 = vpop.permute.xlu0 %425
    %427 = vrot.lane.b32.xlu0 %v342, 19
    %v428 = vpop.permute.xlu0 %427
    %429 = vrot.lane.b32.xlu0 %v343, 19
    %v430 = vpop.permute.xlu0 %429
    %431 = vrot.lane.b32.xlu0 %v344, 19
    %v432 = vpop.permute.xlu0 %431
    %433 = vrot.lane.b32.xlu0 %v345, 19
    %v434 = vpop.permute.xlu0 %433
    %435 = vrot.lane.b32.xlu0 %v346, 19
    %v436 = vpop.permute.xlu0 %435
    %437 = vrot.lane.b32.xlu0 %v347, 19
    %v438 = vpop.permute.xlu0 %437
    %439 = vrot.lane.b32.xlu0 %v348, 19
    %v440 = vpop.permute.xlu0 %439
    %441 = vrot.lane.b32.xlu0 %v349, 19
    %v442 = vpop.permute.xlu0 %441
    %443 = vrot.lane.b32.xlu0 %v350, 19
    %v444 = vpop.permute.xlu0 %443
    %445 = vrot.lane.b32.xlu0 %v351, 19
    %v446 = vpop.permute.xlu0 %445
    %447 = vrot.lane.b32.xlu0 %v352, 19
    %v448 = vpop.permute.xlu0 %447
    %449 = vrot.lane.b32.xlu0 %v353, 19
    %v450 = vpop.permute.xlu0 %449
    %451 = vrot.lane.b32.xlu0 %v354, 19
    %v452 = vpop.permute.xlu0 %451
    %453 = vrot.lane.b32.xlu0 %v355, 19
    %v454 = vpop.permute.xlu0 %453
    %455 = vrot.lane.b32.xlu0 %v356, 19
    %v456 = vpop.permute.xlu0 %455
    %457 = vrot.lane.b32.xlu0 %v357, 19
    %v458 = vpop.permute.xlu0 %457
    %459 = vrot.lane.b32.xlu0 %v358, 19
    %v460 = vpop.permute.xlu0 %459
    %461 = vrot.lane.b32.xlu0 %v359, 19
    %v462 = vpop.permute.xlu0 %461
    %463 = vrot.lane.b32.xlu0 %v360, 19
    %v464 = vpop.permute.xlu0 %463
    %465 = vrot.lane.b32.xlu0 %v361, 19
    %v466 = vpop.permute.xlu0 %465
    %467 = vrot.lane.b32.xlu0 %v362, 19
    %v468 = vpop.permute.xlu0 %467
    %469 = vrot.lane.b32.xlu0 %v363, 19
    %v470 = vpop.permute.xlu0 %469
    %471 = vrot.lane.b32.xlu0 %v364, 19
    %v472 = vpop.permute.xlu0 %471
    %473 = vrot.lane.b32.xlu0 %v365, 19
    %v474 = vpop.permute.xlu0 %473
    %475 = vrot.lane.b32.xlu0 %v366, 19
    %v476 = vpop.permute.xlu0 %475
    %477 = vrot.lane.b32.xlu0 %v367, 19
    %v478 = vpop.permute.xlu0 %477
    %vm479 = vcmask 154624
    %v480 = vsel %vm479, %v410, %v412
    %v481 = vsel %vm479, %v412, %v414
    %v482 = vsel %vm479, %v414, %v416
    %v483 = vsel %vm479, %v416, %v418
    %v484 = vsel %vm479, %v418, %v420
    %v485 = vsel %vm479, %v420, %v422
    %v486 = vsel %vm479, %v424, %v426
    %v487 = vsel %vm479, %v426, %v428
    %v488 = vsel %vm479, %v428, %v430
    %v489 = vsel %vm479, %v430, %v432
    %v490 = vsel %vm479, %v432, %v434
    %v491 = vsel %vm479, %v434, %v436
    %v492 = vsel %vm479, %v438, %v440
    %v493 = vsel %vm479, %v440, %v442
    %v494 = vsel %vm479, %v442, %v444
    %v495 = vsel %vm479, %v444, %v446
    %v496 = vsel %vm479, %v446, %v448
    %v497 = vsel %vm479, %v448, %v450
    %v498 = vsel %vm479, %v452, %v454
    %v499 = vsel %vm479, %v454, %v456
    %v500 = vsel %vm479, %v456, %v458
    %v501 = vsel %vm479, %v458, %v460
    %v502 = vsel %vm479, %v460, %v462
    %v503 = vsel %vm479, %v462, %v464
    %v504 = vsel %vm479, %v466, %v468
    %v505 = vsel %vm479, %v468, %v470
    %v506 = vsel %vm479, %v470, %v472
    %v507 = vsel %vm479, %v472, %v474
    %v508 = vsel %vm479, %v474, %v476
    %v509 = vsel %vm479, %v476, %v478
    %vm534 = vcmask 588800
    %v536 = vsel %vm534, %v332, 0
    %vm538 = vcmask 1043456
    %v540 = vsel %vm538, %v504, 0
    %v543 = vsel %vm538, %v505, 0
    %v546 = vsel %vm538, %v506, 0
    %v549 = vsel %vm538, %v507, 0
    %v552 = vsel %vm538, %v508, 0
    %v555 = vsel %vm538, %v509, 0
    %557 = vmatpush.bf16.msra.mxu0 0
    %558 = vmatpush.bf16.msra.mxu0 0
    %559 = vmatpush.bf16.msra.mxu0 0
    %560 = vmatpush.bf16.msra.mxu0 %v540
    %561 = vmatpush.bf16.msra.mxu0 %v498
    %562 = vmatpush.bf16.msra.mxu0 %v492
    %563 = vmatpush.bf16.msra.mxu0 %v486
    %564 = vmatpush.bf16.msra.mxu0 %v480
    %565 = vmatmul.bf16.gmra.mxu0 %v536
    %v566 = vpop.f32.mrf.mxu0
    %v567 = vadd.f32 %v372, %v566
    %v568 = vpop.f32.mrf.mxu0
    %569 = vdwg.mxu0
    %570 = vmatpush.bf16.msra.mxu0 0
    %571 = vmatpush.bf16.msra.mxu0 0
    %572 = vmatpush.bf16.msra.mxu0 0
    %573 = vmatpush.bf16.msra.mxu0 %v543
    %574 = vmatpush.bf16.msra.mxu0 %v499
    %575 = vmatpush.bf16.msra.mxu0 %v493
    %576 = vmatpush.bf16.msra.mxu0 %v487
    %577 = vmatpush.bf16.msra.mxu0 %v481
    %578 = vmatmul.bf16.gmra.mxu0 %v536
    %v579 = vpop.f32.mrf.mxu0
    %v580 = vadd.f32 %v372, %v579
    %v581 = vpop.f32.mrf.mxu0
    %582 = vdwg.mxu0
    %583 = vmatpush.bf16.msra.mxu0 0
    %584 = vmatpush.bf16.msra.mxu0 0
    %585 = vmatpush.bf16.msra.mxu0 0
    %586 = vmatpush.bf16.msra.mxu0 %v546
    %587 = vmatpush.bf16.msra.mxu0 %v500
    %588 = vmatpush.bf16.msra.mxu0 %v494
    %589 = vmatpush.bf16.msra.mxu0 %v488
    %590 = vmatpush.bf16.msra.mxu0 %v482
    %591 = vmatmul.bf16.gmra.mxu0 %v536
    %v592 = vpop.f32.mrf.mxu0
    %v593 = vadd.f32 %v372, %v592
    %v594 = vpop.f32.mrf.mxu0
    %595 = vdwg.mxu0
    %596 = vmatpush.bf16.msra.mxu0 0
    %597 = vmatpush.bf16.msra.mxu0 0
    %598 = vmatpush.bf16.msra.mxu0 0
    %599 = vmatpush.bf16.msra.mxu0 %v549
    %600 = vmatpush.bf16.msra.mxu0 %v501
    %601 = vmatpush.bf16.msra.mxu0 %v495
    %602 = vmatpush.bf16.msra.mxu0 %v489
    %603 = vmatpush.bf16.msra.mxu0 %v483
    %604 = vmatmul.bf16.gmra.mxu0 %v536
    %v605 = vpop.f32.mrf.mxu0
    %v606 = vadd.f32 %v372, %v605
    %v607 = vpop.f32.mrf.mxu0
    %608 = vdwg.mxu0
    %609 = vmatpush.bf16.msra.mxu0 0
    %610 = vmatpush.bf16.msra.mxu0 0
    %611 = vmatpush.bf16.msra.mxu0 0
    %612 = vmatpush.bf16.msra.mxu0 %v552
    %613 = vmatpush.bf16.msra.mxu0 %v502
    %614 = vmatpush.bf16.msra.mxu0 %v496
    %615 = vmatpush.bf16.msra.mxu0 %v490
    %616 = vmatpush.bf16.msra.mxu0 %v484
    %617 = vmatmul.bf16.gmra.mxu0 %v536
    %v618 = vpop.f32.mrf.mxu0
    %v619 = vadd.f32 %v372, %v618
    %v620 = vpop.f32.mrf.mxu0
    %621 = vdwg.mxu0
    %622 = vmatpush.bf16.msra.mxu0 0
    %623 = vmatpush.bf16.msra.mxu0 0
    %624 = vmatpush.bf16.msra.mxu0 0
    %625 = vmatpush.bf16.msra.mxu0 %v555
    %626 = vmatpush.bf16.msra.mxu0 %v503
    %627 = vmatpush.bf16.msra.mxu0 %v497
    %628 = vmatpush.bf16.msra.mxu0 %v491
    %629 = vmatpush.bf16.msra.mxu0 %v485
    %630 = vmatmul.bf16.gmra.mxu0 %v536
    %v631 = vpop.f32.mrf.mxu0
    %v632 = vadd.f32 %v372, %v631
    %v633 = vpop.f32.mrf.mxu0
    %634 = vdwg.mxu0
    %v635 = vmax.f32 %v567, 0.0
    %v636 = vmax.f32 %v580, 0.0
    %v637 = vmax.f32 %v593, 0.0
    %v638 = vmax.f32 %v606, 0.0
    %v639 = vmax.f32 %v619, 0.0
    %v640 = vmax.f32 %v632, 0.0
    %v641 = vld [vmem:[%s1] sm:$0x3f]
    %v643 = vperm.slane %v641, 0
    %v644 = vperm.slane %v641, 1
    %v645 = vperm.slane %v641, 2
    %v646 = vperm.slane %v641, 3
    %v647 = vperm.slane %v641, 4
    %v648 = vperm.slane %v641, 5
    %v655 = vmul.f32 %v635, %v643
    %v656 = vmul.f32 %v636, %v644
    %v657 = vmul.f32 %v637, %v645
    %v658 = vmul.f32 %v638, %v646
    %v659 = vmul.f32 %v639, %v647
    %v660 = vmul.f32 %v640, %v648
    %661 = vst [vmem:[#allocation3] sm:$0xff] 0.0
    %662 = vst [vmem:[#allocation3 + $0x38] sm:$0xff] 0.0
    %663 = vst [vmem:[#allocation3 + $0x8] sm:$0xff] %v655
    %664 = vst [vmem:[#allocation3 + $0x10] sm:$0xff] %v656
    %665 = vst [vmem:[#allocation3 + $0x18] sm:$0xff] %v657
    %666 = vst [vmem:[#allocation3 + $0x20] sm:$0xff] %v658
    %667 = vst [vmem:[#allocation3 + $0x28] sm:$0xff] %v659
    %668 = vst [vmem:[#allocation3 + $0x30] sm:$0xff] %v660
    %v669 = vld [vmem:[#allocation3] sm:$0xff]
    %v670 = vld [vmem:[#allocation3 + $0x8] sm:$0xff]
    %v671 = vld [vmem:[#allocation3 + $0x10] sm:$0xff]
    %v672 = vld [vmem:[#allocation3 + $0x18] sm:$0xff]
    %v673 = vld [vmem:[#allocation3 + $0x20] sm:$0xff]
    %v674 = vld [vmem:[#allocation3 + $0x28] sm:$0xff]
    %v675 = vld [vmem:[#allocation3 + $0x30] sm:$0xff]
    %v676 = vld [vmem:[#allocation3 + $0x8] sm:$0xff]
    %v677 = vld [vmem:[#allocation3 + $0x10] sm:$0xff]
    %v678 = vld [vmem:[#allocation3 + $0x18] sm:$0xff]
    %v679 = vld [vmem:[#allocation3 + $0x20] sm:$0xff]
    %v680 = vld [vmem:[#allocation3 + $0x28] sm:$0xff]
    %v681 = vld [vmem:[#allocation3 + $0x30] sm:$0xff]
    %v682 = vld [vmem:[#allocation3 + $0x38] sm:$0xff]
    %690 = vrot.lane.b32.xlu0 %v669, 127
    %v691 = vpop.permute.xlu0 %690
    %692 = vrot.lane.b32.xlu0 %v670, 127
    %v693 = vpop.permute.xlu0 %692
    %694 = vrot.lane.b32.xlu0 %v671, 127
    %v695 = vpop.permute.xlu0 %694
    %696 = vrot.lane.b32.xlu0 %v672, 127
    %v697 = vpop.permute.xlu0 %696
    %698 = vrot.lane.b32.xlu0 %v673, 127
    %v699 = vpop.permute.xlu0 %698
    %700 = vrot.lane.b32.xlu0 %v674, 127
    %v701 = vpop.permute.xlu0 %700
    %702 = vrot.lane.b32.xlu0 %v675, 127
    %v703 = vpop.permute.xlu0 %702
    %v704 = vsel %vm118, %v691, %v693
    %v705 = vsel %vm118, %v693, %v695
    %v706 = vsel %vm118, %v695, %v697
    %v707 = vsel %vm118, %v697, %v699
    %v708 = vsel %vm118, %v699, %v701
    %v709 = vsel %vm118, %v701, %v703
    %717 = vrot.lane.b32.xlu0 %v669, 126
    %v718 = vpop.permute.xlu0 %717
    %719 = vrot.lane.b32.xlu0 %v670, 126
    %v720 = vpop.permute.xlu0 %719
    %721 = vrot.lane.b32.xlu0 %v671, 126
    %v722 = vpop.permute.xlu0 %721
    %723 = vrot.lane.b32.xlu0 %v672, 126
    %v724 = vpop.permute.xlu0 %723
    %725 = vrot.lane.b32.xlu0 %v673, 126
    %v726 = vpop.permute.xlu0 %725
    %727 = vrot.lane.b32.xlu0 %v674, 126
    %v728 = vpop.permute.xlu0 %727
    %729 = vrot.lane.b32.xlu0 %v675, 126
    %v730 = vpop.permute.xlu0 %729
    %v731 = vsel %vm146, %v718, %v720
    %v732 = vsel %vm146, %v720, %v722
    %v733 = vsel %vm146, %v722, %v724
    %v734 = vsel %vm146, %v724, %v726
    %v735 = vsel %vm146, %v726, %v728
    %v736 = vsel %vm146, %v728, %v730
    %744 = vrot.lane.b32.xlu0 %v669, 110
    %v745 = vpop.permute.xlu0 %744
    %746 = vrot.lane.b32.xlu0 %v670, 110
    %v747 = vpop.permute.xlu0 %746
    %748 = vrot.lane.b32.xlu0 %v671, 110
    %v749 = vpop.permute.xlu0 %748
    %750 = vrot.lane.b32.xlu0 %v672, 110
    %v751 = vpop.permute.xlu0 %750
    %752 = vrot.lane.b32.xlu0 %v673, 110
    %v753 = vpop.permute.xlu0 %752
    %754 = vrot.lane.b32.xlu0 %v674, 110
    %v755 = vpop.permute.xlu0 %754
    %756 = vrot.lane.b32.xlu0 %v675, 110
    %v757 = vpop.permute.xlu0 %756
    %v758 = vsel %vm174, %v745, %v747
    %v759 = vsel %vm174, %v747, %v749
    %v760 = vsel %vm174, %v749, %v751
    %v761 = vsel %vm174, %v751, %v753
    %v762 = vsel %vm174, %v753, %v755
    %v763 = vsel %vm174, %v755, %v757
    %771 = vrot.lane.b32.xlu0 %v670, 109
    %v772 = vpop.permute.xlu0 %771
    %773 = vrot.lane.b32.xlu0 %v671, 109
    %v774 = vpop.permute.xlu0 %773
    %775 = vrot.lane.b32.xlu0 %v672, 109
    %v776 = vpop.permute.xlu0 %775
    %777 = vrot.lane.b32.xlu0 %v673, 109
    %v778 = vpop.permute.xlu0 %777
    %779 = vrot.lane.b32.xlu0 %v674, 109
    %v780 = vpop.permute.xlu0 %779
    %781 = vrot.lane.b32.xlu0 %v675, 109
    %v782 = vpop.permute.xlu0 %781
    %v783 = vsel %vm200, %v772, %v774
    %v784 = vsel %vm200, %v774, %v776
    %v785 = vsel %vm200, %v776, %v778
    %v786 = vsel %vm200, %v778, %v780
    %v787 = vsel %vm200, %v780, %v782
    %802 = vrot.lane.b32.xlu0 %v676, 108
    %v803 = vpop.permute.xlu0 %802
    %804 = vrot.lane.b32.xlu0 %v677, 108
    %v805 = vpop.permute.xlu0 %804
    %806 = vrot.lane.b32.xlu0 %v678, 108
    %v807 = vpop.permute.xlu0 %806
    %808 = vrot.lane.b32.xlu0 %v679, 108
    %v809 = vpop.permute.xlu0 %808
    %810 = vrot.lane.b32.xlu0 %v680, 108
    %v811 = vpop.permute.xlu0 %810
    %812 = vrot.lane.b32.xlu0 %v681, 108
    %v813 = vpop.permute.xlu0 %812
    %814 = vrot.lane.b32.xlu0 %v682, 108
    %v815 = vpop.permute.xlu0 %814
    %v816 = vsel %vm234, %v803, %v805
    %v817 = vsel %vm234, %v805, %v807
    %v818 = vsel %vm234, %v807, %v809
    %v819 = vsel %vm234, %v809, %v811
    %v820 = vsel %vm234, %v811, %v813
    %v821 = vsel %vm234, %v813, %v815
    %829 = vrot.lane.b32.xlu0 %v676, 92
    %v830 = vpop.permute.xlu0 %829
    %831 = vrot.lane.b32.xlu0 %v677, 92
    %v832 = vpop.permute.xlu0 %831
    %833 = vrot.lane.b32.xlu0 %v678, 92
    %v834 = vpop.permute.xlu0 %833
    %835 = vrot.lane.b32.xlu0 %v679, 92
    %v836 = vpop.permute.xlu0 %835
    %837 = vrot.lane.b32.xlu0 %v680, 92
    %v838 = vpop.permute.xlu0 %837
    %839 = vrot.lane.b32.xlu0 %v681, 92
    %v840 = vpop.permute.xlu0 %839
    %841 = vrot.lane.b32.xlu0 %v682, 92
    %v842 = vpop.permute.xlu0 %841
    %v843 = vsel %vm262, %v830, %v832
    %v844 = vsel %vm262, %v832, %v834
    %v845 = vsel %vm262, %v834, %v836
    %v846 = vsel %vm262, %v836, %v838
    %v847 = vsel %vm262, %v838, %v840
    %v848 = vsel %vm262, %v840, %v842
    %856 = vrot.lane.b32.xlu0 %v676, 91
    %v857 = vpop.permute.xlu0 %856
    %858 = vrot.lane.b32.xlu0 %v677, 91
    %v859 = vpop.permute.xlu0 %858
    %860 = vrot.lane.b32.xlu0 %v678, 91
    %v861 = vpop.permute.xlu0 %860
    %862 = vrot.lane.b32.xlu0 %v679, 91
    %v863 = vpop.permute.xlu0 %862
    %864 = vrot.lane.b32.xlu0 %v680, 91
    %v865 = vpop.permute.xlu0 %864
    %866 = vrot.lane.b32.xlu0 %v681, 91
    %v867 = vpop.permute.xlu0 %866
    %868 = vrot.lane.b32.xlu0 %v682, 91
    %v869 = vpop.permute.xlu0 %868
    %v870 = vsel %vm290, %v857, %v859
    %v871 = vsel %vm290, %v859, %v861
    %v872 = vsel %vm290, %v861, %v863
    %v873 = vsel %vm290, %v863, %v865
    %v874 = vsel %vm290, %v865, %v867
    %v875 = vsel %vm290, %v867, %v869
    %883 = vrot.lane.b32.xlu0 %v676, 90
    %v884 = vpop.permute.xlu0 %883
    %885 = vrot.lane.b32.xlu0 %v677, 90
    %v886 = vpop.permute.xlu0 %885
    %887 = vrot.lane.b32.xlu0 %v678, 90
    %v888 = vpop.permute.xlu0 %887
    %889 = vrot.lane.b32.xlu0 %v679, 90
    %v890 = vpop.permute.xlu0 %889
    %891 = vrot.lane.b32.xlu0 %v680, 90
    %v892 = vpop.permute.xlu0 %891
    %893 = vrot.lane.b32.xlu0 %v681, 90
    %v894 = vpop.permute.xlu0 %893
    %895 = vrot.lane.b32.xlu0 %v682, 90
    %v896 = vpop.permute.xlu0 %895
    %v897 = vsel %vm318, %v884, %v886
    %v898 = vsel %vm318, %v886, %v888
    %v899 = vsel %vm318, %v888, %v890
    %v900 = vsel %vm318, %v890, %v892
    %v901 = vsel %vm318, %v892, %v894
    %v902 = vsel %vm318, %v894, %v896
    %v910 = vld [vmem:[%s4] sm:$0xf]
    %v911 = vpack.c.bf16 %v704, %v669
    %v912 = vpack.c.bf16 %v705, %v670
    %v913 = vpack.c.bf16 %v706, %v671
    %v914 = vpack.c.bf16 %v707, %v672
    %v915 = vpack.c.bf16 %v708, %v673
    %v916 = vpack.c.bf16 %v709, %v674
    %v917 = vpack.c.bf16 %v703, %v675
    %v918 = vpack.c.bf16 %v758, %v731
    %v919 = vpack.c.bf16 %v759, %v732
    %v920 = vpack.c.bf16 %v760, %v733
    %v921 = vpack.c.bf16 %v761, %v734
    %v922 = vpack.c.bf16 %v762, %v735
    %v923 = vpack.c.bf16 %v763, %v736
    %v924 = vpack.c.bf16 %v757, %v730
    %v925 = vpack.c.bf16 %v803, %v772
    %v926 = vpack.c.bf16 %v816, %v783
    %v927 = vpack.c.bf16 %v817, %v784
    %v928 = vpack.c.bf16 %v818, %v785
    %v929 = vpack.c.bf16 %v819, %v786
    %v930 = vpack.c.bf16 %v820, %v787
    %v931 = vpack.c.bf16 %v821, %v782
    %v932 = vpack.c.bf16 %v857, %v830
    %v933 = vpack.c.bf16 %v870, %v843
    %v934 = vpack.c.bf16 %v871, %v844
    %v935 = vpack.c.bf16 %v872, %v845
    %v936 = vpack.c.bf16 %v873, %v846
    %v937 = vpack.c.bf16 %v874, %v847
    %v938 = vpack.c.bf16 %v875, %v848
    %v939 = vpack.c.bf16 %v884, %v884
    %v940 = vpack.c.bf16 %v897, %v897
    %v941 = vpack.c.bf16 %v898, %v898
    %v942 = vpack.c.bf16 %v899, %v899
    %v943 = vpack.c.bf16 %v900, %v900
    %v944 = vpack.c.bf16 %v901, %v901
    %v945 = vpack.c.bf16 %v902, %v902
    %v946 = vld [vmem:[%s5] sm:$0xff]
    %948 = vset.pattern.permute.xlu0 0
    %949 = vperm.xlu0 %948, %v946
    %v950 = vpop.permute.xlu0 %949
    %987 = vrot.lane.b32.xlu0 %v911, 19
    %v988 = vpop.permute.xlu0 %987
    %989 = vrot.lane.b32.xlu0 %v912, 19
    %v990 = vpop.permute.xlu0 %989
    %991 = vrot.lane.b32.xlu0 %v913, 19
    %v992 = vpop.permute.xlu0 %991
    %993 = vrot.lane.b32.xlu0 %v914, 19
    %v994 = vpop.permute.xlu0 %993
    %995 = vrot.lane.b32.xlu0 %v915, 19
    %v996 = vpop.permute.xlu0 %995
    %997 = vrot.lane.b32.xlu0 %v916, 19
    %v998 = vpop.permute.xlu0 %997
    %999 = vrot.lane.b32.xlu0 %v917, 19
    %v1000 = vpop.permute.xlu0 %999
    %1001 = vrot.lane.b32.xlu0 %v918, 19
    %v1002 = vpop.permute.xlu0 %1001
    %1003 = vrot.lane.b32.xlu0 %v919, 19
    %v1004 = vpop.permute.xlu0 %1003
    %1005 = vrot.lane.b32.xlu0 %v920, 19
    %v1006 = vpop.permute.xlu0 %1005
    %1007 = vrot.lane.b32.xlu0 %v921, 19
    %v1008 = vpop.permute.xlu0 %1007
    %1009 = vrot.lane.b32.xlu0 %v922, 19
    %v1010 = vpop.permute.xlu0 %1009
    %1011 = vrot.lane.b32.xlu0 %v923, 19
    %v1012 = vpop.permute.xlu0 %1011
    %1013 = vrot.lane.b32.xlu0 %v924, 19
    %v1014 = vpop.permute.xlu0 %1013
    %1015 = vrot.lane.b32.xlu0 %v925, 19
    %v1016 = vpop.permute.xlu0 %1015
    %1017 = vrot.lane.b32.xlu0 %v926, 19
    %v1018 = vpop.permute.xlu0 %1017
    %1019 = vrot.lane.b32.xlu0 %v927, 19
    %v1020 = vpop.permute.xlu0 %1019
    %1021 = vrot.lane.b32.xlu0 %v928, 19
    %v1022 = vpop.permute.xlu0 %1021
    %1023 = vrot.lane.b32.xlu0 %v929, 19
    %v1024 = vpop.permute.xlu0 %1023
    %1025 = vrot.lane.b32.xlu0 %v930, 19
    %v1026 = vpop.permute.xlu0 %1025
    %1027 = vrot.lane.b32.xlu0 %v931, 19
    %v1028 = vpop.permute.xlu0 %1027
    %1029 = vrot.lane.b32.xlu0 %v932, 19
    %v1030 = vpop.permute.xlu0 %1029
    %1031 = vrot.lane.b32.xlu0 %v933, 19
    %v1032 = vpop.permute.xlu0 %1031
    %1033 = vrot.lane.b32.xlu0 %v934, 19
    %v1034 = vpop.permute.xlu0 %1033
    %1035 = vrot.lane.b32.xlu0 %v935, 19
    %v1036 = vpop.permute.xlu0 %1035
    %1037 = vrot.lane.b32.xlu0 %v936, 19
    %v1038 = vpop.permute.xlu0 %1037
    %1039 = vrot.lane.b32.xlu0 %v937, 19
    %v1040 = vpop.permute.xlu0 %1039
    %1041 = vrot.lane.b32.xlu0 %v938, 19
    %v1042 = vpop.permute.xlu0 %1041
    %1043 = vrot.lane.b32.xlu0 %v939, 19
    %v1044 = vpop.permute.xlu0 %1043
    %1045 = vrot.lane.b32.xlu0 %v940, 19
    %v1046 = vpop.permute.xlu0 %1045
    %1047 = vrot.lane.b32.xlu0 %v941, 19
    %v1048 = vpop.permute.xlu0 %1047
    %1049 = vrot.lane.b32.xlu0 %v942, 19
    %v1050 = vpop.permute.xlu0 %1049
    %1051 = vrot.lane.b32.xlu0 %v943, 19
    %v1052 = vpop.permute.xlu0 %1051
    %1053 = vrot.lane.b32.xlu0 %v944, 19
    %v1054 = vpop.permute.xlu0 %1053
    %1055 = vrot.lane.b32.xlu0 %v945, 19
    %v1056 = vpop.permute.xlu0 %1055
    %v1057 = vsel %vm479, %v988, %v990
    %v1058 = vsel %vm479, %v990, %v992
    %v1059 = vsel %vm479, %v992, %v994
    %v1060 = vsel %vm479, %v994, %v996
    %v1061 = vsel %vm479, %v996, %v998
    %v1062 = vsel %vm479, %v998, %v1000
    %v1063 = vsel %vm479, %v1002, %v1004
    %v1064 = vsel %vm479, %v1004, %v1006
    %v1065 = vsel %vm479, %v1006, %v1008
    %v1066 = vsel %vm479, %v1008, %v1010
    %v1067 = vsel %vm479, %v1010, %v1012
    %v1068 = vsel %vm479, %v1012, %v1014
    %v1069 = vsel %vm479, %v1016, %v1018
    %v1070 = vsel %vm479, %v1018, %v1020
    %v1071 = vsel %vm479, %v1020, %v1022
    %v1072 = vsel %vm479, %v1022, %v1024
    %v1073 = vsel %vm479, %v1024, %v1026
    %v1074 = vsel %vm479, %v1026, %v1028
    %v1075 = vsel %vm479, %v1030, %v1032
    %v1076 = vsel %vm479, %v1032, %v1034
    %v1077 = vsel %vm479, %v1034, %v1036
    %v1078 = vsel %vm479, %v1036, %v1038
    %v1079 = vsel %vm479, %v1038, %v1040
    %v1080 = vsel %vm479, %v1040, %v1042
    %v1081 = vsel %vm479, %v1044, %v1046
    %v1082 = vsel %vm479, %v1046, %v1048
    %v1083 = vsel %vm479, %v1048, %v1050
    %v1084 = vsel %vm479, %v1050, %v1052
    %v1085 = vsel %vm479, %v1052, %v1054
    %v1086 = vsel %vm479, %v1054, %v1056
    %v1112 = vsel %vm534, %v910, 0
    %v1115 = vsel %vm538, %v1081, 0
    %v1118 = vsel %vm538, %v1082, 0
    %v1121 = vsel %vm538, %v1083, 0
    %v1124 = vsel %vm538, %v1084, 0
    %v1127 = vsel %vm538, %v1085, 0
    %v1130 = vsel %vm538, %v1086, 0
    %1132 = vmatpush.bf16.msra.mxu0 0
    %1133 = vmatpush.bf16.msra.mxu0 0
    %1134 = vmatpush.bf16.msra.mxu0 0
    %1135 = vmatpush.bf16.msra.mxu0 %v1115
    %1136 = vmatpush.bf16.msra.mxu0 %v1075
    %1137 = vmatpush.bf16.msra.mxu0 %v1069
    %1138 = vmatpush.bf16.msra.mxu0 %v1063
    %1139 = vmatpush.bf16.msra.mxu0 %v1057
    %1140 = vmatmul.bf16.gmra.mxu0 %v1112
    %v1141 = vpop.f32.mrf.mxu0
    %v1142 = vadd.f32 %v950, %v1141
    %v1143 = vpop.f32.mrf.mxu0
    %1144 = vdwg.mxu0
    %1145 = vmatpush.bf16.msra.mxu0 0
    %1146 = vmatpush.bf16.msra.mxu0 0
    %1147 = vmatpush.bf16.msra.mxu0 0
    %1148 = vmatpush.bf16.msra.mxu0 %v1118
    %1149 = vmatpush.bf16.msra.mxu0 %v1076
    %1150 = vmatpush.bf16.msra.mxu0 %v1070
    %1151 = vmatpush.bf16.msra.mxu0 %v1064
    %1152 = vmatpush.bf16.msra.mxu0 %v1058
    %1153 = vmatmul.bf16.gmra.mxu0 %v1112
    %v1154 = vpop.f32.mrf.mxu0
    %v1155 = vadd.f32 %v950, %v1154
    %v1156 = vpop.f32.mrf.mxu0
    %1157 = vdwg.mxu0
    %1158 = vmatpush.bf16.msra.mxu0 0
    %1159 = vmatpush.bf16.msra.mxu0 0
    %1160 = vmatpush.bf16.msra.mxu0 0
    %1161 = vmatpush.bf16.msra.mxu0 %v1121
    %1162 = vmatpush.bf16.msra.mxu0 %v1077
    %1163 = vmatpush.bf16.msra.mxu0 %v1071
    %1164 = vmatpush.bf16.msra.mxu0 %v1065
    %1165 = vmatpush.bf16.msra.mxu0 %v1059
    %1166 = vmatmul.bf16.gmra.mxu0 %v1112
    %v1167 = vpop.f32.mrf.mxu0
    %v1168 = vadd.f32 %v950, %v1167
    %v1169 = vpop.f32.mrf.mxu0
    %1170 = vdwg.mxu0
    %1171 = vmatpush.bf16.msra.mxu0 0
    %1172 = vmatpush.bf16.msra.mxu0 0
    %1173 = vmatpush.bf16.msra.mxu0 0
    %1174 = vmatpush.bf16.msra.mxu0 %v1124
    %1175 = vmatpush.bf16.msra.mxu0 %v1078
    %1176 = vmatpush.bf16.msra.mxu0 %v1072
    %1177 = vmatpush.bf16.msra.mxu0 %v1066
    %1178 = vmatpush.bf16.msra.mxu0 %v1060
    %1179 = vmatmul.bf16.gmra.mxu0 %v1112
    %v1180 = vpop.f32.mrf.mxu0
    %v1181 = vadd.f32 %v950, %v1180
    %v1182 = vpop.f32.mrf.mxu0
    %1183 = vdwg.mxu0
    %1184 = vmatpush.bf16.msra.mxu0 0
    %1185 = vmatpush.bf16.msra.mxu0 0
    %1186 = vmatpush.bf16.msra.mxu0 0
    %1187 = vmatpush.bf16.msra.mxu0 %v1127
    %1188 = vmatpush.bf16.msra.mxu0 %v1079
    %1189 = vmatpush.bf16.msra.mxu0 %v1073
    %1190 = vmatpush.bf16.msra.mxu0 %v1067
    %1191 = vmatpush.bf16.msra.mxu0 %v1061
    %1192 = vmatmul.bf16.gmra.mxu0 %v1112
    %v1193 = vpop.f32.mrf.mxu0
    %v1194 = vadd.f32 %v950, %v1193
    %v1195 = vpop.f32.mrf.mxu0
    %1196 = vdwg.mxu0
    %1197 = vmatpush.bf16.msra.mxu0 0
    %1198 = vmatpush.bf16.msra.mxu0 0
    %1199 = vmatpush.bf16.msra.mxu0 0
    %1200 = vmatpush.bf16.msra.mxu0 %v1130
    %1201 = vmatpush.bf16.msra.mxu0 %v1080
    %1202 = vmatpush.bf16.msra.mxu0 %v1074
    %1203 = vmatpush.bf16.msra.mxu0 %v1068
    %1204 = vmatpush.bf16.msra.mxu0 %v1062
    %1205 = vmatmul.bf16.gmra.mxu0 %v1112
    %v1206 = vpop.f32.mrf.mxu0
    %v1207 = vadd.f32 %v950, %v1206
    %v1208 = vpop.f32.mrf.mxu0
    %1209 = vdwg.mxu0
    %v1210 = vld [vmem:[#allocation2 + $0x8] sm:$0xff]
    %v1211 = vld [vmem:[#allocation2 + $0x10] sm:$0xff]
    %v1212 = vld [vmem:[#allocation2 + $0x18] sm:$0xff]
    %v1213 = vld [vmem:[#allocation2 + $0x20] sm:$0xff]
    %v1214 = vld [vmem:[#allocation2 + $0x28] sm:$0xff]
    %v1215 = vld [vmem:[#allocation2 + $0x30] sm:$0xff]
    %v1216 = vadd.f32 %v1210, %v1142
    %v1217 = vadd.f32 %v1211, %v1155
    %v1218 = vadd.f32 %v1212, %v1168
    %v1219 = vadd.f32 %v1213, %v1181
    %v1220 = vadd.f32 %v1214, %v1194
    %v1221 = vadd.f32 %v1215, %v1207
    %v1222 = vmax.f32 %v1216, 0.0
    %v1223 = vmax.f32 %v1217, 0.0
    %v1224 = vmax.f32 %v1218, 0.0
    %v1225 = vmax.f32 %v1219, 0.0
    %v1226 = vmax.f32 %v1220, 0.0
    %v1227 = vmax.f32 %v1221, 0.0
    %1228 = vst [vmem:[#allocation7] sm:$0xff] %v1222
    %1229 = vst [vmem:[#allocation7 + $0x8] sm:$0xff] %v1223
    %1230 = vst [vmem:[#allocation7 + $0x10] sm:$0xff] %v1224
    %1231 = vst [vmem:[#allocation7 + $0x18] sm:$0xff] %v1225
    %1232 = vst [vmem:[#allocation7 + $0x20] sm:$0xff] %v1226
    %1233 = vst [vmem:[#allocation7 + $0x28] sm:$0xff] %v1227
    // Predicated region
    $region30: #{tpu_custom_call.1} parent=1 // pred_check
      _
    $region31: #{tpu_custom_call.1} parent=1 // pred_check_branch
      %1235 = sbr.rel (0) target = $region33
    $region32: #{tpu_custom_call.1} parent=1 // pred_region
      %1237 = vsyncadd [#allocation6], 0
      %s1239 = sshll.u32 [#allocation7], 4
      %s1240 = int_to_ptr.vmem [resolvable:$true] %s1239
      %s1241 = sshll.u32 %s6, 4
      %s1242 = int_to_ptr.hbm [resolvable:$true] %s1241
      %1244 = dma.vmem_to_hbm [thread:$0]  %s1240, 768, %s1242, [#allocation6]
    $region33: #{tpu_custom_call.1} parent=1 // pred_fallthru
      _
    // Predicated region
    $region34: #{tpu_custom_call.1} parent=1 // pred_check
      _
    $region35: #{tpu_custom_call.1} parent=1 // pred_check_branch
      %1246 = sbr.rel (0) target = $region37
    $region36: #{tpu_custom_call.1} parent=1 // pred_region
      %1248 = dma.done [#allocation6], 768
    $region37: #{tpu_custom_call.1} parent=1 // pred_fallthru
      _
    %1249 = vsyncpa [#allocation5], 1
    %1250 = vsyncpa [#allocation6], 1

</llo_original>
